<compile_context>
chip_gen: v7x
topology: tpu7x:2x2x1
jax: 0.10.0
libtpu: 0.0.40
codegen_flags: <defaults>
</compile_context>

<pallas_src>
import jax
import jax.numpy as jnp
import numpy as np
from jax.experimental import pallas as pl
from jax.experimental.pallas import tpu as pltpu


_MAX_INFLIGHT_DMAS = 16  # outstanding-copy cap; sems are cheap, deep enough for v7x


def _torch_linspace_f32(start: float, end: float, steps: int) -> np.ndarray:
    """Replicates torch.linspace's float32 kernel (float32 step, two-sided formula)."""
    if steps == 1:
        return np.array([start], dtype=np.float32)
    start32 = np.float32(start)
    end32 = np.float32(end)
    step = (end32 - start32) / np.float32(steps - 1)
    i = np.arange(steps)
    lo = start32 + step * i.astype(np.float32)
    hi = end32 - step * (steps - 1 - i).astype(np.float32)
    return np.where(i < steps // 2, lo, hi).astype(np.float32)


def _subsample_indices(t: int, num_samples: int) -> np.ndarray:
    """linspace(0, T-1, N) in float32 (torch parity), clamp, truncate to int."""
    idx = _torch_linspace_f32(0.0, float(t - 1), num_samples)
    idx = np.clip(idx, 0, t - 1)
    return idx.astype(np.int64)  # non-negative -> trunc toward zero, like .long()


def _coalesce_runs(indices: np.ndarray):
    """Group maximal runs of consecutive source indices.

    Output slots are always contiguous, so a run where indices[j+1] == indices[j]+1
    becomes a single (dst_start, src_start, length) multi-frame copy.
    """
    descs = []
    n = int(indices.shape[0])
    j = 0
    while j < n:
        start = j
        while j + 1 < n and int(indices[j + 1]) == int(indices[j]) + 1:
            j += 1
        descs.append((start, int(indices[start]), j - start + 1))
        j += 1
    return descs


def _make_gather_kernel(descs, n_sems: int):
    """Kernel copying each run of frames src->dst with direct HBM->HBM DMAs."""
    n = len(descs)
    # Note: fully unrolled at trace time.  For very large descriptor counts
    # (>~64 after coalescing) an SMEM index table + lax.fori_loop would bound
    # program size; unnecessary for typical num_samples <= 32.

    def kernel(x_hbm, o_hbm, sems):
        inflight = []
        for k, (dst, src, length) in enumerate(descs):
            # Ring of n_sems outstanding copies.  When n <= n_sems this never
            # triggers: all copies are issued back-to-back and drained below.
            if k >= n_sems:
                inflight[k - n_sems].wait()
            cp = pltpu.make_async_copy(
                x_hbm.at[:, pl.ds(src, length)],   # (lead, length, trail) source run
                o_hbm.at[:, pl.ds(dst, length)],   # (lead, length, trail) dest run
                sems.at[k % n_sems],
            )
            cp.start()
            inflight.append(cp)
        # Drain everything still in flight.
        for k in range(max(0, n - n_sems), n):
            inflight[k].wait()

    return kernel


def uniform_temporal_subsample(x: jax.Array, num_samples: int) -> jax.Array:
    """Gather `num_samples` uniformly spaced frames along dim -3."""
    if x.ndim < 3:
        raise ValueError("expected input of rank >= 3 with temporal dim at -3")
    t_axis = x.ndim - 3
    T = x.shape[t_axis]
    indices = _subsample_indices(T, num_samples)

    # Fast path: identity subsample -> no data movement needed at all.
    if num_samples == T and np.array_equal(indices, np.arange(T)):
        return x

    lead = int(np.prod(x.shape[:t_axis], dtype=np.int64)) if t_axis > 0 else 1
    trail = int(np.prod(x.shape[t_axis + 1:], dtype=np.int64))

    # Free, contiguous reshape -> lane/byte-dense last axis for the DMA rows.
    x3 = x.reshape(lead, T, trail)

    descs = _coalesce_runs(indices)
    # TODO(synk): collapse constant-stride (>1) index progressions into ONE
    # strided DMA (pl.ds(start, N, stride=s)) once Mosaic supports strided
    # slices in make_async_copy; run-coalescing already covers stride-1 runs.
    n_sems = max(1, min(_MAX_INFLIGHT_DMAS, len(descs)))
    kernel = _make_gather_kernel(descs, n_sems)

    itemsize = int(np.dtype(x.dtype).itemsize)
    bytes_accessed = 2 * lead * num_samples * trail * itemsize  # read + write

    out3 = pl.pallas_call(
        kernel,
        out_shape=jax.ShapeDtypeStruct((lead, num_samples, trail), x.dtype),
        in_specs=[pl.BlockSpec(memory_space=pl.ANY)],   # raw HBM ref, no auto-DMA
        out_specs=pl.BlockSpec(memory_space=pl.ANY),    # raw HBM ref, DMA-written
        scratch_shapes=[pltpu.SemaphoreType.DMA((n_sems,))],
        cost_estimate=pl.CostEstimate(
            flops=0, transcendentals=0, bytes_accessed=bytes_accessed
        ),
    )(x3)

    out_shape = x.shape[:t_axis] + (num_samples,) + x.shape[t_axis + 1:]
    return out3.reshape(out_shape)


class UniformTemporalSubsample:
    """JAX/Pallas equivalent of the PyTorch nn.Module wrapper."""

    def __init__(self, num_samples: int):
        self._num_samples = num_samples

    def __call__(self, x: jax.Array) -> jax.Array:
        return uniform_temporal_subsample(x, self._num_samples)


if __name__ == "__main__":
    key = jax.random.PRNGKey(0)

    def run_case(k, shape, num_samples):
        x = jax.random.normal(k, shape, dtype=jnp.float32)
        out = jax.block_until_ready(UniformTemporalSubsample(num_samples)(x))
        t_axis = x.ndim - 3
        idx = _subsample_indices(shape[t_axis], num_samples)
        ref = jnp.take(x, jnp.asarray(idx, dtype=jnp.int32), axis=t_axis)
        assert out.shape == ref.shape
        assert out.dtype == x.dtype
        assert bool(jnp.array_equal(out, ref))

    k0, k1, k2, k3 = jax.random.split(key, 4)
    # Primary case: (C,T,H,W)=(4,16,16,16), N=8 -> general gather path.
    run_case(k0, (4, 16, 16, 16), 8)
    # Oversampling (N > T): duplicate indices + coalesced consecutive runs.
    run_case(k1, (2, 4, 8, 8), 8)
    # Leading batch dim (rank-5), evenly spaced indices, temporal dim is -3.
    run_case(k2, (2, 3, 10, 8, 8), 4)
    # Identity fast path (N == T): kernel bypassed entirely.
    run_case(k3, (3, 8, 8, 8), 8)
    print("KERNEL_OK")
</pallas_src>

<mosaic_0001>
module attributes {stable_mosaic.version = 11 : i64} {
  func.func @kernel(%arg0: memref<4x16x256xf32, #tpu.memory_space<any>>, %arg1: memref<4x8x256xf32, #tpu.memory_space<any>>, %arg2: memref<8x!tpu.dma_semaphore, #tpu.memory_space<semaphore_mem>>) attributes {dimension_semantics = [], scalar_prefetch = 0 : i64, scratch_operands = 1 : i64, tpu.core_type = #tpu.core_type<tc>} {
    %c0_i32 = arith.constant 0 : i32
    %c0_i32_0 = arith.constant 0 : i32
    %c0_i32_1 = arith.constant 0 : i32
    %c0_i32_2 = arith.constant 0 : i32
    %0 = tpu.memref_slice %arg0[%c0_i32_0, %c0_i32_1, %c0_i32_2] : memref<4x16x256xf32, #tpu.memory_space<any>> -> memref<4x1x256xf32, #tpu.memory_space<any>>
    %c0_i32_3 = arith.constant 0 : i32
    %c0_i32_4 = arith.constant 0 : i32
    %c0_i32_5 = arith.constant 0 : i32
    %1 = tpu.memref_slice %arg1[%c0_i32_3, %c0_i32_4, %c0_i32_5] : memref<4x8x256xf32, #tpu.memory_space<any>> -> memref<4x1x256xf32, #tpu.memory_space<any>>
    %2 = tpu.memref_slice %arg2[%c0_i32] : memref<8x!tpu.dma_semaphore, #tpu.memory_space<semaphore_mem>> -> memref<1x!tpu.dma_semaphore, #tpu.memory_space<semaphore_mem>>
    %3 = tpu.memref_squeeze %2 : memref<1x!tpu.dma_semaphore, #tpu.memory_space<semaphore_mem>> -> memref<!tpu.dma_semaphore, #tpu.memory_space<semaphore_mem>>
    tpu.enqueue_dma source(%0 : memref<4x1x256xf32, #tpu.memory_space<any>>) target(%1 : memref<4x1x256xf32, #tpu.memory_space<any>>) target_semaphore(%3 : memref<!tpu.dma_semaphore, #tpu.memory_space<semaphore_mem>>)
    %c1_i32 = arith.constant 1 : i32
    %c0_i32_6 = arith.constant 0 : i32
    %c2_i32 = arith.constant 2 : i32
    %c0_i32_7 = arith.constant 0 : i32
    %4 = tpu.memref_slice %arg0[%c0_i32_6, %c2_i32, %c0_i32_7] : memref<4x16x256xf32, #tpu.memory_space<any>> -> memref<4x1x256xf32, #tpu.memory_space<any>>
    %c0_i32_8 = arith.constant 0 : i32
    %c1_i32_9 = arith.constant 1 : i32
    %c0_i32_10 = arith.constant 0 : i32
    %5 = tpu.memref_slice %arg1[%c0_i32_8, %c1_i32_9, %c0_i32_10] : memref<4x8x256xf32, #tpu.memory_space<any>> -> memref<4x1x256xf32, #tpu.memory_space<any>>
    %6 = tpu.memref_slice %arg2[%c1_i32] : memref<8x!tpu.dma_semaphore, #tpu.memory_space<semaphore_mem>> -> memref<1x!tpu.dma_semaphore, #tpu.memory_space<semaphore_mem>>
    %7 = tpu.memref_squeeze %6 : memref<1x!tpu.dma_semaphore, #tpu.memory_space<semaphore_mem>> -> memref<!tpu.dma_semaphore, #tpu.memory_space<semaphore_mem>>
    tpu.enqueue_dma source(%4 : memref<4x1x256xf32, #tpu.memory_space<any>>) target(%5 : memref<4x1x256xf32, #tpu.memory_space<any>>) target_semaphore(%7 : memref<!tpu.dma_semaphore, #tpu.memory_space<semaphore_mem>>)
    %c2_i32_11 = arith.constant 2 : i32
    %c0_i32_12 = arith.constant 0 : i32
    %c4_i32 = arith.constant 4 : i32
    %c0_i32_13 = arith.constant 0 : i32
    %8 = tpu.memref_slice %arg0[%c0_i32_12, %c4_i32, %c0_i32_13] : memref<4x16x256xf32, #tpu.memory_space<any>> -> memref<4x1x256xf32, #tpu.memory_space<any>>
    %c0_i32_14 = arith.constant 0 : i32
    %c2_i32_15 = arith.constant 2 : i32
    %c0_i32_16 = arith.constant 0 : i32
    %9 = tpu.memref_slice %arg1[%c0_i32_14, %c2_i32_15, %c0_i32_16] : memref<4x8x256xf32, #tpu.memory_space<any>> -> memref<4x1x256xf32, #tpu.memory_space<any>>
    %10 = tpu.memref_slice %arg2[%c2_i32_11] : memref<8x!tpu.dma_semaphore, #tpu.memory_space<semaphore_mem>> -> memref<1x!tpu.dma_semaphore, #tpu.memory_space<semaphore_mem>>
    %11 = tpu.memref_squeeze %10 : memref<1x!tpu.dma_semaphore, #tpu.memory_space<semaphore_mem>> -> memref<!tpu.dma_semaphore, #tpu.memory_space<semaphore_mem>>
    tpu.enqueue_dma source(%8 : memref<4x1x256xf32, #tpu.memory_space<any>>) target(%9 : memref<4x1x256xf32, #tpu.memory_space<any>>) target_semaphore(%11 : memref<!tpu.dma_semaphore, #tpu.memory_space<semaphore_mem>>)
    %c3_i32 = arith.constant 3 : i32
    %c0_i32_17 = arith.constant 0 : i32
    %c6_i32 = arith.constant 6 : i32
    %c0_i32_18 = arith.constant 0 : i32
    %12 = tpu.memref_slice %arg0[%c0_i32_17, %c6_i32, %c0_i32_18] : memref<4x16x256xf32, #tpu.memory_space<any>> -> memref<4x1x256xf32, #tpu.memory_space<any>>
    %c0_i32_19 = arith.constant 0 : i32
    %c3_i32_20 = arith.constant 3 : i32
    %c0_i32_21 = arith.constant 0 : i32
    %13 = tpu.memref_slice %arg1[%c0_i32_19, %c3_i32_20, %c0_i32_21] : memref<4x8x256xf32, #tpu.memory_space<any>> -> memref<4x1x256xf32, #tpu.memory_space<any>>
    %14 = tpu.memref_slice %arg2[%c3_i32] : memref<8x!tpu.dma_semaphore, #tpu.memory_space<semaphore_mem>> -> memref<1x!tpu.dma_semaphore, #tpu.memory_space<semaphore_mem>>
    %15 = tpu.memref_squeeze %14 : memref<1x!tpu.dma_semaphore, #tpu.memory_space<semaphore_mem>> -> memref<!tpu.dma_semaphore, #tpu.memory_space<semaphore_mem>>
    tpu.enqueue_dma source(%12 : memref<4x1x256xf32, #tpu.memory_space<any>>) target(%13 : memref<4x1x256xf32, #tpu.memory_space<any>>) target_semaphore(%15 : memref<!tpu.dma_semaphore, #tpu.memory_space<semaphore_mem>>)
    %c4_i32_22 = arith.constant 4 : i32
    %c0_i32_23 = arith.constant 0 : i32
    %c8_i32 = arith.constant 8 : i32
    %c0_i32_24 = arith.constant 0 : i32
    %16 = tpu.memref_slice %arg0[%c0_i32_23, %c8_i32, %c0_i32_24] : memref<4x16x256xf32, #tpu.memory_space<any>> -> memref<4x1x256xf32, #tpu.memory_space<any>>
    %c0_i32_25 = arith.constant 0 : i32
    %c4_i32_26 = arith.constant 4 : i32
    %c0_i32_27 = arith.constant 0 : i32
    %17 = tpu.memref_slice %arg1[%c0_i32_25, %c4_i32_26, %c0_i32_27] : memref<4x8x256xf32, #tpu.memory_space<any>> -> memref<4x1x256xf32, #tpu.memory_space<any>>
    %18 = tpu.memref_slice %arg2[%c4_i32_22] : memref<8x!tpu.dma_semaphore, #tpu.memory_space<semaphore_mem>> -> memref<1x!tpu.dma_semaphore, #tpu.memory_space<semaphore_mem>>
    %19 = tpu.memref_squeeze %18 : memref<1x!tpu.dma_semaphore, #tpu.memory_space<semaphore_mem>> -> memref<!tpu.dma_semaphore, #tpu.memory_space<semaphore_mem>>
    tpu.enqueue_dma source(%16 : memref<4x1x256xf32, #tpu.memory_space<any>>) target(%17 : memref<4x1x256xf32, #tpu.memory_space<any>>) target_semaphore(%19 : memref<!tpu.dma_semaphore, #tpu.memory_space<semaphore_mem>>)
    %c5_i32 = arith.constant 5 : i32
    %c0_i32_28 = arith.constant 0 : i32
    %c10_i32 = arith.constant 10 : i32
    %c0_i32_29 = arith.constant 0 : i32
    %20 = tpu.memref_slice %arg0[%c0_i32_28, %c10_i32, %c0_i32_29] : memref<4x16x256xf32, #tpu.memory_space<any>> -> memref<4x1x256xf32, #tpu.memory_space<any>>
    %c0_i32_30 = arith.constant 0 : i32
    %c5_i32_31 = arith.constant 5 : i32
    %c0_i32_32 = arith.constant 0 : i32
    %21 = tpu.memref_slice %arg1[%c0_i32_30, %c5_i32_31, %c0_i32_32] : memref<4x8x256xf32, #tpu.memory_space<any>> -> memref<4x1x256xf32, #tpu.memory_space<any>>
    %22 = tpu.memref_slice %arg2[%c5_i32] : memref<8x!tpu.dma_semaphore, #tpu.memory_space<semaphore_mem>> -> memref<1x!tpu.dma_semaphore, #tpu.memory_space<semaphore_mem>>
    %23 = tpu.memref_squeeze %22 : memref<1x!tpu.dma_semaphore, #tpu.memory_space<semaphore_mem>> -> memref<!tpu.dma_semaphore, #tpu.memory_space<semaphore_mem>>
    tpu.enqueue_dma source(%20 : memref<4x1x256xf32, #tpu.memory_space<any>>) target(%21 : memref<4x1x256xf32, #tpu.memory_space<any>>) target_semaphore(%23 : memref<!tpu.dma_semaphore, #tpu.memory_space<semaphore_mem>>)
    %c6_i32_33 = arith.constant 6 : i32
    %c0_i32_34 = arith.constant 0 : i32
    %c12_i32 = arith.constant 12 : i32
    %c0_i32_35 = arith.constant 0 : i32
    %24 = tpu.memref_slice %arg0[%c0_i32_34, %c12_i32, %c0_i32_35] : memref<4x16x256xf32, #tpu.memory_space<any>> -> memref<4x1x256xf32, #tpu.memory_space<any>>
    %c0_i32_36 = arith.constant 0 : i32
    %c6_i32_37 = arith.constant 6 : i32
    %c0_i32_38 = arith.constant 0 : i32
    %25 = tpu.memref_slice %arg1[%c0_i32_36, %c6_i32_37, %c0_i32_38] : memref<4x8x256xf32, #tpu.memory_space<any>> -> memref<4x1x256xf32, #tpu.memory_space<any>>
    %26 = tpu.memref_slice %arg2[%c6_i32_33] : memref<8x!tpu.dma_semaphore, #tpu.memory_space<semaphore_mem>> -> memref<1x!tpu.dma_semaphore, #tpu.memory_space<semaphore_mem>>
    %27 = tpu.memref_squeeze %26 : memref<1x!tpu.dma_semaphore, #tpu.memory_space<semaphore_mem>> -> memref<!tpu.dma_semaphore, #tpu.memory_space<semaphore_mem>>
    tpu.enqueue_dma source(%24 : memref<4x1x256xf32, #tpu.memory_space<any>>) target(%25 : memref<4x1x256xf32, #tpu.memory_space<any>>) target_semaphore(%27 : memref<!tpu.dma_semaphore, #tpu.memory_space<semaphore_mem>>)
    %c7_i32 = arith.constant 7 : i32
    %c0_i32_39 = arith.constant 0 : i32
    %c15_i32 = arith.constant 15 : i32
    %c0_i32_40 = arith.constant 0 : i32
    %28 = tpu.memref_slice %arg0[%c0_i32_39, %c15_i32, %c0_i32_40] : memref<4x16x256xf32, #tpu.memory_space<any>> -> memref<4x1x256xf32, #tpu.memory_space<any>>
    %c0_i32_41 = arith.constant 0 : i32
    %c7_i32_42 = arith.constant 7 : i32
    %c0_i32_43 = arith.constant 0 : i32
    %29 = tpu.memref_slice %arg1[%c0_i32_41, %c7_i32_42, %c0_i32_43] : memref<4x8x256xf32, #tpu.memory_space<any>> -> memref<4x1x256xf32, #tpu.memory_space<any>>
    %30 = tpu.memref_slice %arg2[%c7_i32] : memref<8x!tpu.dma_semaphore, #tpu.memory_space<semaphore_mem>> -> memref<1x!tpu.dma_semaphore, #tpu.memory_space<semaphore_mem>>
    %31 = tpu.memref_squeeze %30 : memref<1x!tpu.dma_semaphore, #tpu.memory_space<semaphore_mem>> -> memref<!tpu.dma_semaphore, #tpu.memory_space<semaphore_mem>>
    tpu.enqueue_dma source(%28 : memref<4x1x256xf32, #tpu.memory_space<any>>) target(%29 : memref<4x1x256xf32, #tpu.memory_space<any>>) target_semaphore(%31 : memref<!tpu.dma_semaphore, #tpu.memory_space<semaphore_mem>>)
    %c0_i32_44 = arith.constant 0 : i32
    %c0_i32_45 = arith.constant 0 : i32
    %c0_i32_46 = arith.constant 0 : i32
    %c0_i32_47 = arith.constant 0 : i32
    %32 = tpu.memref_slice %arg0[%c0_i32_45, %c0_i32_46, %c0_i32_47] : memref<4x16x256xf32, #tpu.memory_space<any>> -> memref<4x1x256xf32, #tpu.memory_space<any>>
    %c0_i32_48 = arith.constant 0 : i32
    %c0_i32_49 = arith.constant 0 : i32
    %c0_i32_50 = arith.constant 0 : i32
    %33 = tpu.memref_slice %arg1[%c0_i32_48, %c0_i32_49, %c0_i32_50] : memref<4x8x256xf32, #tpu.memory_space<any>> -> memref<4x1x256xf32, #tpu.memory_space<any>>
    %34 = tpu.memref_slice %arg2[%c0_i32_44] : memref<8x!tpu.dma_semaphore, #tpu.memory_space<semaphore_mem>> -> memref<1x!tpu.dma_semaphore, #tpu.memory_space<semaphore_mem>>
    %35 = tpu.memref_squeeze %34 : memref<1x!tpu.dma_semaphore, #tpu.memory_space<semaphore_mem>> -> memref<!tpu.dma_semaphore, #tpu.memory_space<semaphore_mem>>
    tpu.wait_dma2 semaphore(%35 : memref<!tpu.dma_semaphore, #tpu.memory_space<semaphore_mem>>) src(%32 : memref<4x1x256xf32, #tpu.memory_space<any>>) dst(%33 : memref<4x1x256xf32, #tpu.memory_space<any>>)
    %c1_i32_51 = arith.constant 1 : i32
    %c0_i32_52 = arith.constant 0 : i32
    %c2_i32_53 = arith.constant 2 : i32
    %c0_i32_54 = arith.constant 0 : i32
    %36 = tpu.memref_slice %arg0[%c0_i32_52, %c2_i32_53, %c0_i32_54] : memref<4x16x256xf32, #tpu.memory_space<any>> -> memref<4x1x256xf32, #tpu.memory_space<any>>
    %c0_i32_55 = arith.constant 0 : i32
    %c1_i32_56 = arith.constant 1 : i32
    %c0_i32_57 = arith.constant 0 : i32
    %37 = tpu.memref_slice %arg1[%c0_i32_55, %c1_i32_56, %c0_i32_57] : memref<4x8x256xf32, #tpu.memory_space<any>> -> memref<4x1x256xf32, #tpu.memory_space<any>>
    %38 = tpu.memref_slice %arg2[%c1_i32_51] : memref<8x!tpu.dma_semaphore, #tpu.memory_space<semaphore_mem>> -> memref<1x!tpu.dma_semaphore, #tpu.memory_space<semaphore_mem>>
    %39 = tpu.memref_squeeze %38 : memref<1x!tpu.dma_semaphore, #tpu.memory_space<semaphore_mem>> -> memref<!tpu.dma_semaphore, #tpu.memory_space<semaphore_mem>>
    tpu.wait_dma2 semaphore(%39 : memref<!tpu.dma_semaphore, #tpu.memory_space<semaphore_mem>>) src(%36 : memref<4x1x256xf32, #tpu.memory_space<any>>) dst(%37 : memref<4x1x256xf32, #tpu.memory_space<any>>)
    %c2_i32_58 = arith.constant 2 : i32
    %c0_i32_59 = arith.constant 0 : i32
    %c4_i32_60 = arith.constant 4 : i32
    %c0_i32_61 = arith.constant 0 : i32
    %40 = tpu.memref_slice %arg0[%c0_i32_59, %c4_i32_60, %c0_i32_61] : memref<4x16x256xf32, #tpu.memory_space<any>> -> memref<4x1x256xf32, #tpu.memory_space<any>>
    %c0_i32_62 = arith.constant 0 : i32
    %c2_i32_63 = arith.constant 2 : i32
    %c0_i32_64 = arith.constant 0 : i32
    %41 = tpu.memref_slice %arg1[%c0_i32_62, %c2_i32_63, %c0_i32_64] : memref<4x8x256xf32, #tpu.memory_space<any>> -> memref<4x1x256xf32, #tpu.memory_space<any>>
    %42 = tpu.memref_slice %arg2[%c2_i32_58] : memref<8x!tpu.dma_semaphore, #tpu.memory_space<semaphore_mem>> -> memref<1x!tpu.dma_semaphore, #tpu.memory_space<semaphore_mem>>
    %43 = tpu.memref_squeeze %42 : memref<1x!tpu.dma_semaphore, #tpu.memory_space<semaphore_mem>> -> memref<!tpu.dma_semaphore, #tpu.memory_space<semaphore_mem>>
    tpu.wait_dma2 semaphore(%43 : memref<!tpu.dma_semaphore, #tpu.memory_space<semaphore_mem>>) src(%40 : memref<4x1x256xf32, #tpu.memory_space<any>>) dst(%41 : memref<4x1x256xf32, #tpu.memory_space<any>>)
    %c3_i32_65 = arith.constant 3 : i32
    %c0_i32_66 = arith.constant 0 : i32
    %c6_i32_67 = arith.constant 6 : i32
    %c0_i32_68 = arith.constant 0 : i32
    %44 = tpu.memref_slice %arg0[%c0_i32_66, %c6_i32_67, %c0_i32_68] : memref<4x16x256xf32, #tpu.memory_space<any>> -> memref<4x1x256xf32, #tpu.memory_space<any>>
    %c0_i32_69 = arith.constant 0 : i32
    %c3_i32_70 = arith.constant 3 : i32
    %c0_i32_71 = arith.constant 0 : i32
    %45 = tpu.memref_slice %arg1[%c0_i32_69, %c3_i32_70, %c0_i32_71] : memref<4x8x256xf32, #tpu.memory_space<any>> -> memref<4x1x256xf32, #tpu.memory_space<any>>
    %46 = tpu.memref_slice %arg2[%c3_i32_65] : memref<8x!tpu.dma_semaphore, #tpu.memory_space<semaphore_mem>> -> memref<1x!tpu.dma_semaphore, #tpu.memory_space<semaphore_mem>>
    %47 = tpu.memref_squeeze %46 : memref<1x!tpu.dma_semaphore, #tpu.memory_space<semaphore_mem>> -> memref<!tpu.dma_semaphore, #tpu.memory_space<semaphore_mem>>
    tpu.wait_dma2 semaphore(%47 : memref<!tpu.dma_semaphore, #tpu.memory_space<semaphore_mem>>) src(%44 : memref<4x1x256xf32, #tpu.memory_space<any>>) dst(%45 : memref<4x1x256xf32, #tpu.memory_space<any>>)
    %c4_i32_72 = arith.constant 4 : i32
    %c0_i32_73 = arith.constant 0 : i32
    %c8_i32_74 = arith.constant 8 : i32
    %c0_i32_75 = arith.constant 0 : i32
    %48 = tpu.memref_slice %arg0[%c0_i32_73, %c8_i32_74, %c0_i32_75] : memref<4x16x256xf32, #tpu.memory_space<any>> -> memref<4x1x256xf32, #tpu.memory_space<any>>
    %c0_i32_76 = arith.constant 0 : i32
    %c4_i32_77 = arith.constant 4 : i32
    %c0_i32_78 = arith.constant 0 : i32
    %49 = tpu.memref_slice %arg1[%c0_i32_76, %c4_i32_77, %c0_i32_78] : memref<4x8x256xf32, #tpu.memory_space<any>> -> memref<4x1x256xf32, #tpu.memory_space<any>>
    %50 = tpu.memref_slice %arg2[%c4_i32_72] : memref<8x!tpu.dma_semaphore, #tpu.memory_space<semaphore_mem>> -> memref<1x!tpu.dma_semaphore, #tpu.memory_space<semaphore_mem>>
    %51 = tpu.memref_squeeze %50 : memref<1x!tpu.dma_semaphore, #tpu.memory_space<semaphore_mem>> -> memref<!tpu.dma_semaphore, #tpu.memory_space<semaphore_mem>>
    tpu.wait_dma2 semaphore(%51 : memref<!tpu.dma_semaphore, #tpu.memory_space<semaphore_mem>>) src(%48 : memref<4x1x256xf32, #tpu.memory_space<any>>) dst(%49 : memref<4x1x256xf32, #tpu.memory_space<any>>)
    %c5_i32_79 = arith.constant 5 : i32
    %c0_i32_80 = arith.constant 0 : i32
    %c10_i32_81 = arith.constant 10 : i32
    %c0_i32_82 = arith.constant 0 : i32
    %52 = tpu.memref_slice %arg0[%c0_i32_80, %c10_i32_81, %c0_i32_82] : memref<4x16x256xf32, #tpu.memory_space<any>> -> memref<4x1x256xf32, #tpu.memory_space<any>>
    %c0_i32_83 = arith.constant 0 : i32
    %c5_i32_84 = arith.constant 5 : i32
    %c0_i32_85 = arith.constant 0 : i32
    %53 = tpu.memref_slice %arg1[%c0_i32_83, %c5_i32_84, %c0_i32_85] : memref<4x8x256xf32, #tpu.memory_space<any>> -> memref<4x1x256xf32, #tpu.memory_space<any>>
    %54 = tpu.memref_slice %arg2[%c5_i32_79] : memref<8x!tpu.dma_semaphore, #tpu.memory_space<semaphore_mem>> -> memref<1x!tpu.dma_semaphore, #tpu.memory_space<semaphore_mem>>
    %55 = tpu.memref_squeeze %54 : memref<1x!tpu.dma_semaphore, #tpu.memory_space<semaphore_mem>> -> memref<!tpu.dma_semaphore, #tpu.memory_space<semaphore_mem>>
    tpu.wait_dma2 semaphore(%55 : memref<!tpu.dma_semaphore, #tpu.memory_space<semaphore_mem>>) src(%52 : memref<4x1x256xf32, #tpu.memory_space<any>>) dst(%53 : memref<4x1x256xf32, #tpu.memory_space<any>>)
    %c6_i32_86 = arith.constant 6 : i32
    %c0_i32_87 = arith.constant 0 : i32
    %c12_i32_88 = arith.constant 12 : i32
    %c0_i32_89 = arith.constant 0 : i32
    %56 = tpu.memref_slice %arg0[%c0_i32_87, %c12_i32_88, %c0_i32_89] : memref<4x16x256xf32, #tpu.memory_space<any>> -> memref<4x1x256xf32, #tpu.memory_space<any>>
    %c0_i32_90 = arith.constant 0 : i32
    %c6_i32_91 = arith.constant 6 : i32
    %c0_i32_92 = arith.constant 0 : i32
    %57 = tpu.memref_slice %arg1[%c0_i32_90, %c6_i32_91, %c0_i32_92] : memref<4x8x256xf32, #tpu.memory_space<any>> -> memref<4x1x256xf32, #tpu.memory_space<any>>
    %58 = tpu.memref_slice %arg2[%c6_i32_86] : memref<8x!tpu.dma_semaphore, #tpu.memory_space<semaphore_mem>> -> memref<1x!tpu.dma_semaphore, #tpu.memory_space<semaphore_mem>>
    %59 = tpu.memref_squeeze %58 : memref<1x!tpu.dma_semaphore, #tpu.memory_space<semaphore_mem>> -> memref<!tpu.dma_semaphore, #tpu.memory_space<semaphore_mem>>
    tpu.wait_dma2 semaphore(%59 : memref<!tpu.dma_semaphore, #tpu.memory_space<semaphore_mem>>) src(%56 : memref<4x1x256xf32, #tpu.memory_space<any>>) dst(%57 : memref<4x1x256xf32, #tpu.memory_space<any>>)
    %c7_i32_93 = arith.constant 7 : i32
    %c0_i32_94 = arith.constant 0 : i32
    %c15_i32_95 = arith.constant 15 : i32
    %c0_i32_96 = arith.constant 0 : i32
    %60 = tpu.memref_slice %arg0[%c0_i32_94, %c15_i32_95, %c0_i32_96] : memref<4x16x256xf32, #tpu.memory_space<any>> -> memref<4x1x256xf32, #tpu.memory_space<any>>
    %c0_i32_97 = arith.constant 0 : i32
    %c7_i32_98 = arith.constant 7 : i32
    %c0_i32_99 = arith.constant 0 : i32
    %61 = tpu.memref_slice %arg1[%c0_i32_97, %c7_i32_98, %c0_i32_99] : memref<4x8x256xf32, #tpu.memory_space<any>> -> memref<4x1x256xf32, #tpu.memory_space<any>>
    %62 = tpu.memref_slice %arg2[%c7_i32_93] : memref<8x!tpu.dma_semaphore, #tpu.memory_space<semaphore_mem>> -> memref<1x!tpu.dma_semaphore, #tpu.memory_space<semaphore_mem>>
    %63 = tpu.memref_squeeze %62 : memref<1x!tpu.dma_semaphore, #tpu.memory_space<semaphore_mem>> -> memref<!tpu.dma_semaphore, #tpu.memory_space<semaphore_mem>>
    tpu.wait_dma2 semaphore(%63 : memref<!tpu.dma_semaphore, #tpu.memory_space<semaphore_mem>>) src(%60 : memref<4x1x256xf32, #tpu.memory_space<any>>) dst(%61 : memref<4x1x256xf32, #tpu.memory_space<any>>)
    return
  }
}

</mosaic_0001>

<llo_original>
// kernel: tpu_custom_call.1
$region0: #{tpu_custom_call.1}
  #allocation0 [shape = 'u32[]', space=smem, size = 0x4, offset = 0x4, fixed_abs, tag = 'smem constant byte address 0x4 - core index']
  #allocation1 [shape = 'u32[144,128]{1,0:T(1,128)}', space=vmem, size = 0x12000, scoped, tag = 'internal scratch']
  #allocation2 [shape = 's32[8]{0}', space=sflag, size = 0x20, scoped, tag = 'scratch operand']
  #allocation3 [shape = 's32[]', space=sflag, size = 0x4, offset = 0, fixed_abs, tag = 'sflag constant byte address 0x0 - dummy sync flag']
  #allocation5 [shape = 's32[]', space=sflag, size = 0x4, offset = 0, fixed_abs, tag = 'sflag constant byte address 0x0 - dummy sync flag']
  #allocation7 [shape = 's32[]', space=sflag, size = 0x4, offset = 0, fixed_abs, tag = 'sflag constant byte address 0x0 - dummy sync flag']
  #allocation9 [shape = 's32[]', space=sflag, size = 0x4, offset = 0, fixed_abs, tag = 'sflag constant byte address 0x0 - dummy sync flag']
  #allocation11 [shape = 's32[]', space=sflag, size = 0x4, offset = 0, fixed_abs, tag = 'sflag constant byte address 0x0 - dummy sync flag']
  #allocation13 [shape = 's32[]', space=sflag, size = 0x4, offset = 0, fixed_abs, tag = 'sflag constant byte address 0x0 - dummy sync flag']
  #allocation15 [shape = 's32[]', space=sflag, size = 0x4, offset = 0, fixed_abs, tag = 'sflag constant byte address 0x0 - dummy sync flag']
  #allocation17 [shape = 's32[]', space=sflag, size = 0x4, offset = 0, fixed_abs, tag = 'sflag constant byte address 0x0 - dummy sync flag']
  %s0 = inlined_call_operand.hbm [shape: f32[4,16,256], index: 0, kind: input, shape index: {}]
  %s1 = inlined_call_operand.hbm [shape: f32[4,8,256], index: 1, kind: output, shape index: {}]
  %s2 = sld [smem:[#allocation0]]
  $region2: #{tpu_custom_call.1} parent=0
    _
  %s4 = ssub.s32 1, %s2
  %s5 = scalar_select 0, %s4, %s2
  $region1: #{tpu_custom_call.1} parent=0
    #allocation4 [shape = 'u32[6]{0}', space=smem, size = 0x18, scoped, tag = 'DMA stride descriptor']
    #allocation6 [shape = 'u32[6]{0}', space=smem, size = 0x18, scoped, tag = 'DMA stride descriptor']
    #allocation8 [shape = 'u32[6]{0}', space=smem, size = 0x18, scoped, tag = 'DMA stride descriptor']
    #allocation10 [shape = 'u32[6]{0}', space=smem, size = 0x18, scoped, tag = 'DMA stride descriptor']
    #allocation12 [shape = 'u32[6]{0}', space=smem, size = 0x18, scoped, tag = 'DMA stride descriptor']
    #allocation14 [shape = 'u32[6]{0}', space=smem, size = 0x18, scoped, tag = 'DMA stride descriptor']
    #allocation16 [shape = 'u32[6]{0}', space=smem, size = 0x18, scoped, tag = 'DMA stride descriptor']
    #allocation18 [shape = 'u32[6]{0}', space=smem, size = 0x18, scoped, tag = 'DMA stride descriptor']
    %s7 = sshll.u32 1, 14
    %s8 = sxor.u32 4294967295, %s7
    %s11 = sshll.u32 3, 24
    %s12 = sxor.u32 4294967295, %s11
    %s13 = sand.u32 0, %s12
    %s15 = sor.u32 %s13, 0
    %18 = sst [smem:[#allocation4]] 512
    %s19 = scalar_lea.smem [#allocation4], 1
    %20 = sst [smem:[%s19]] 256
    %s21 = scalar_lea.smem [#allocation4], 2
    %22 = sst [smem:[%s21]] 2
    %s23 = scalar_lea.smem [#allocation4], 3
    %24 = sst [smem:[%s23]] 128
    %s25 = scalar_lea.smem [#allocation4], 4
    %26 = sst [smem:[%s25]] 128
    %s27 = scalar_lea.smem [#allocation4], 5
    %28 = sst [smem:[%s27]] 1
    %30 = dma.general %s0, 128, %s1, [#allocation2], [#allocation3], [#allocation4], %s15, 0
    %s31 = scalar_lea.hbm %s0, 32
    %s32 = scalar_lea.hbm %s1, 16
    %s33 = scalar_lea.sflag [#allocation2], 1
    %s35 = sshll.u32 1, 14
    %s36 = sxor.u32 4294967295, %s35
    %s39 = sshll.u32 3, 24
    %s40 = sxor.u32 4294967295, %s39
    %s41 = sand.u32 0, %s40
    %s43 = sor.u32 %s41, 0
    %46 = sst [smem:[#allocation6]] 512
    %s47 = scalar_lea.smem [#allocation6], 1
    %48 = sst [smem:[%s47]] 256
    %s49 = scalar_lea.smem [#allocation6], 2
    %50 = sst [smem:[%s49]] 2
    %s51 = scalar_lea.smem [#allocation6], 3
    %52 = sst [smem:[%s51]] 128
    %s53 = scalar_lea.smem [#allocation6], 4
    %54 = sst [smem:[%s53]] 128
    %s55 = scalar_lea.smem [#allocation6], 5
    %56 = sst [smem:[%s55]] 1
    %58 = dma.general %s31, 128, %s32, %s33, [#allocation5], [#allocation6], %s43, 0
    %s59 = scalar_lea.hbm %s0, 64
    %s60 = scalar_lea.hbm %s1, 32
    %s61 = scalar_lea.sflag [#allocation2], 2
    %s63 = sshll.u32 1, 14
    %s64 = sxor.u32 4294967295, %s63
    %s67 = sshll.u32 3, 24
    %s68 = sxor.u32 4294967295, %s67
    %s69 = sand.u32 0, %s68
    %s71 = sor.u32 %s69, 0
    %74 = sst [smem:[#allocation8]] 512
    %s75 = scalar_lea.smem [#allocation8], 1
    %76 = sst [smem:[%s75]] 256
    %s77 = scalar_lea.smem [#allocation8], 2
    %78 = sst [smem:[%s77]] 2
    %s79 = scalar_lea.smem [#allocation8], 3
    %80 = sst [smem:[%s79]] 128
    %s81 = scalar_lea.smem [#allocation8], 4
    %82 = sst [smem:[%s81]] 128
    %s83 = scalar_lea.smem [#allocation8], 5
    %84 = sst [smem:[%s83]] 1
    %86 = dma.general %s59, 128, %s60, %s61, [#allocation7], [#allocation8], %s71, 0
    %s87 = scalar_lea.hbm %s0, 96
    %s88 = scalar_lea.hbm %s1, 48
    %s89 = scalar_lea.sflag [#allocation2], 3
    %s91 = sshll.u32 1, 14
    %s92 = sxor.u32 4294967295, %s91
    %s95 = sshll.u32 3, 24
    %s96 = sxor.u32 4294967295, %s95
    %s97 = sand.u32 0, %s96
    %s99 = sor.u32 %s97, 0
    %102 = sst [smem:[#allocation10]] 512
    %s103 = scalar_lea.smem [#allocation10], 1
    %104 = sst [smem:[%s103]] 256
    %s105 = scalar_lea.smem [#allocation10], 2
    %106 = sst [smem:[%s105]] 2
    %s107 = scalar_lea.smem [#allocation10], 3
    %108 = sst [smem:[%s107]] 128
    %s109 = scalar_lea.smem [#allocation10], 4
    %110 = sst [smem:[%s109]] 128
    %s111 = scalar_lea.smem [#allocation10], 5
    %112 = sst [smem:[%s111]] 1
    %114 = dma.general %s87, 128, %s88, %s89, [#allocation9], [#allocation10], %s99, 0
    %s115 = scalar_lea.hbm %s0, 256
    %s116 = scalar_lea.hbm %s1, 64
    %s117 = scalar_lea.sflag [#allocation2], 4
    %s119 = sshll.u32 1, 14
    %s120 = sxor.u32 4294967295, %s119
    %s123 = sshll.u32 3, 24
    %s124 = sxor.u32 4294967295, %s123
    %s125 = sand.u32 0, %s124
    %s127 = sor.u32 %s125, 0
    %130 = sst [smem:[#allocation12]] 512
    %s131 = scalar_lea.smem [#allocation12], 1
    %132 = sst [smem:[%s131]] 256
    %s133 = scalar_lea.smem [#allocation12], 2
    %134 = sst [smem:[%s133]] 2
    %s135 = scalar_lea.smem [#allocation12], 3
    %136 = sst [smem:[%s135]] 128
    %s137 = scalar_lea.smem [#allocation12], 4
    %138 = sst [smem:[%s137]] 128
    %s139 = scalar_lea.smem [#allocation12], 5
    %140 = sst [smem:[%s139]] 1
    %142 = dma.general %s115, 128, %s116, %s117, [#allocation11], [#allocation12], %s127, 0
    %s143 = scalar_lea.hbm %s0, 288
    %s144 = scalar_lea.hbm %s1, 80
    %s145 = scalar_lea.sflag [#allocation2], 5
    %s147 = sshll.u32 1, 14
    %s148 = sxor.u32 4294967295, %s147
    %s151 = sshll.u32 3, 24
    %s152 = sxor.u32 4294967295, %s151
    %s153 = sand.u32 0, %s152
    %s155 = sor.u32 %s153, 0
    %158 = sst [smem:[#allocation14]] 512
    %s159 = scalar_lea.smem [#allocation14], 1
    %160 = sst [smem:[%s159]] 256
    %s161 = scalar_lea.smem [#allocation14], 2
    %162 = sst [smem:[%s161]] 2
    %s163 = scalar_lea.smem [#allocation14], 3
    %164 = sst [smem:[%s163]] 128
    %s165 = scalar_lea.smem [#allocation14], 4
    %166 = sst [smem:[%s165]] 128
    %s167 = scalar_lea.smem [#allocation14], 5
    %168 = sst [smem:[%s167]] 1
    %170 = dma.general %s143, 128, %s144, %s145, [#allocation13], [#allocation14], %s155, 0
    %s171 = scalar_lea.hbm %s0, 320
    %s172 = scalar_lea.hbm %s1, 96
    %s173 = scalar_lea.sflag [#allocation2], 6
    %s175 = sshll.u32 1, 14
    %s176 = sxor.u32 4294967295, %s175
    %s179 = sshll.u32 3, 24
    %s180 = sxor.u32 4294967295, %s179
    %s181 = sand.u32 0, %s180
    %s183 = sor.u32 %s181, 0
    %186 = sst [smem:[#allocation16]] 512
    %s187 = scalar_lea.smem [#allocation16], 1
    %188 = sst [smem:[%s187]] 256
    %s189 = scalar_lea.smem [#allocation16], 2
    %190 = sst [smem:[%s189]] 2
    %s191 = scalar_lea.smem [#allocation16], 3
    %192 = sst [smem:[%s191]] 128
    %s193 = scalar_lea.smem [#allocation16], 4
    %194 = sst [smem:[%s193]] 128
    %s195 = scalar_lea.smem [#allocation16], 5
    %196 = sst [smem:[%s195]] 1
    %198 = dma.general %s171, 128, %s172, %s173, [#allocation15], [#allocation16], %s183, 0
    %s199 = scalar_lea.hbm %s0, 368
    %s200 = scalar_lea.hbm %s1, 112
    %s201 = scalar_lea.sflag [#allocation2], 7
    %s203 = sshll.u32 1, 14
    %s204 = sxor.u32 4294967295, %s203
    %s207 = sshll.u32 3, 24
    %s208 = sxor.u32 4294967295, %s207
    %s209 = sand.u32 0, %s208
    %s211 = sor.u32 %s209, 0
    %214 = sst [smem:[#allocation18]] 512
    %s215 = scalar_lea.smem [#allocation18], 1
    %216 = sst [smem:[%s215]] 256
    %s217 = scalar_lea.smem [#allocation18], 2
    %218 = sst [smem:[%s217]] 2
    %s219 = scalar_lea.smem [#allocation18], 3
    %220 = sst [smem:[%s219]] 128
    %s221 = scalar_lea.smem [#allocation18], 4
    %222 = sst [smem:[%s221]] 128
    %s223 = scalar_lea.smem [#allocation18], 5
    %224 = sst [smem:[%s223]] 1
    %226 = dma.general %s199, 128, %s200, %s201, [#allocation17], [#allocation18], %s211, 0
    %s227 = smul.u32 4, 1
    %s228 = smul.u32 %s227, 2
    %s229 = sshll.u32 %s228, 4
    %230 = dma.done [#allocation2], %s229
    %s231 = sshll.u32 %s228, 4
    %232 = dma.done %s33, %s231
    %s233 = sshll.u32 %s228, 4
    %234 = dma.done %s61, %s233
    %s235 = sshll.u32 %s228, 4
    %236 = dma.done %s89, %s235
    %s237 = sshll.u32 %s228, 4
    %238 = dma.done %s117, %s237
    %s239 = sshll.u32 %s228, 4
    %240 = dma.done %s145, %s239
    %s241 = sshll.u32 %s228, 4
    %242 = dma.done %s173, %s241
    %s243 = sshll.u32 %s228, 4
    %244 = dma.done %s201, %s243
  %245 = vsyncmov [#allocation2]
  %s246 = vpop.sfrf %245
  %p247 = scmp.eq.s32.totalorder %s246, 0
  %p248 = pneg %p247
  %250 = shalt.err (%p248)
  %s251 = scalar_lea.sflag [#allocation2], 1
  %252 = vsyncmov %s251
  %s253 = vpop.sfrf %252
  %p254 = scmp.eq.s32.totalorder %s253, 0
  %p255 = pneg %p254
  %257 = shalt.err (%p255)
  %s258 = scalar_lea.sflag [#allocation2], 2
  %259 = vsyncmov %s258
  %s260 = vpop.sfrf %259
  %p261 = scmp.eq.s32.totalorder %s260, 0
  %p262 = pneg %p261
  %264 = shalt.err (%p262)
  %s265 = scalar_lea.sflag [#allocation2], 3
  %266 = vsyncmov %s265
  %s267 = vpop.sfrf %266
  %p268 = scmp.eq.s32.totalorder %s267, 0
  %p269 = pneg %p268
  %271 = shalt.err (%p269)
  %s272 = scalar_lea.sflag [#allocation2], 4
  %273 = vsyncmov %s272
  %s274 = vpop.sfrf %273
  %p275 = scmp.eq.s32.totalorder %s274, 0
  %p276 = pneg %p275
  %278 = shalt.err (%p276)
  %s279 = scalar_lea.sflag [#allocation2], 5
  %280 = vsyncmov %s279
  %s281 = vpop.sfrf %280
  %p282 = scmp.eq.s32.totalorder %s281, 0
  %p283 = pneg %p282
  %285 = shalt.err (%p283)
  %s286 = scalar_lea.sflag [#allocation2], 6
  %287 = vsyncmov %s286
  %s288 = vpop.sfrf %287
  %p289 = scmp.eq.s32.totalorder %s288, 0
  %p290 = pneg %p289
  %292 = shalt.err (%p290)
  %s293 = scalar_lea.sflag [#allocation2], 7
  %294 = vsyncmov %s293
  %s295 = vpop.sfrf %294
  %p296 = scmp.eq.s32.totalorder %s295, 0
  %p297 = pneg %p296
  %299 = shalt.err (%p297)

</llo_original>
